<compile_context>
chip_gen: v7x
topology: tpu7x:2x2x1
jax: 0.10.0
libtpu: 0.0.40
codegen_flags: <defaults>
</compile_context>

<pallas_src>
import functools

import jax
import jax.numpy as jnp
import numpy as np
from jax import lax
from jax.experimental import pallas as pl
from jax.experimental.pallas import tpu as pltpu

BN_EPS = 1e-5
_LANE = 128


def _round_up(v, m):
    return ((v + m - 1) // m) * m


def _cat_dil_conv_kernel(x_ref, w_ref, sh_ref, out_ref, r_ref, *,
                         dilations, dm, Wp, Qt, ch, cin):
    """One (batch, row-tile) per grid step.

    x_ref  : (1, 1, Cin, Lt)   flattened zero-padded row slab (spatial on lanes)
    w_ref  : (nD, Ch, 9*Cin)   folded conv*BN weights, tap-major columns
    sh_ref : (nD, Ch, 1)       folded bias/BN shift
    out_ref: (1, 1, Cout, Qt)  lane-dense output slab
    r_ref  : (9*Cin, Qt)       VMEM scratch: im2col matrix (reused per branch)
    """
    xf = x_ref[0, 0]                                    # (Cin, Lt)
    for b, d in enumerate(dilations):
        # Build the im2col RHS: 9 lane-shifted copies of the slab.
        t = 0
        for ky in range(3):
            for kx in range(3):
                s = ((dm - d) + ky * d) * Wp + (dm - d) + kx * d
                r_ref[pl.ds(t * cin, cin), :] = xf[:, s:s + Qt]
                t += 1
        # One MXU matmul per branch: (Ch, 9*Cin) @ (9*Cin, Qt).
        y = jnp.dot(w_ref[b], r_ref[...], preferred_element_type=jnp.float32)
        y = jnp.maximum(y + sh_ref[b], 0.0)             # folded BN shift + ReLU
        # Write straight into this branch's channel slice (no concat).
        out_ref[0, 0, pl.ds(b * ch, ch), :] = y


def cat_dilation_conv2d_batch_relu(x_nchw, params, dilations=(1, 2), eps=BN_EPS):
    """params: list of len(dilations) tuples
       (w[Ch,Cin,3,3], b[Ch], gamma[Ch], beta[Ch], mean[Ch], var[Ch])."""
    N, Cin, H, W = x_nchw.shape
    nD = len(dilations)
    dm = max(dilations)
    Wp = W + 2 * dm

    # Row tiling with halo (halo rows replicated into each slab so plain
    # BlockSpecs can express it); grows the grid for pipelining / megacore.
    tH = 8 if (H % 8 == 0 and H > 8) else H
    nT = H // tH

    Qt = _round_up(tH * Wp, _LANE)                      # lane-dense output cols
    s_max = max((dm + d) * (Wp + 1) for d in dilations)  # largest tap shift
    Lt = _round_up(max((tH + 2 * dm) * Wp, Qt + s_max), _LANE)

    # ---- fold conv bias + BN into the weights (trace time, tiny arrays) ----
    def fold(p):
        w, b, gamma, beta, mean, var = p                # w: (Ch, Cin, 3, 3)
        ch = w.shape[0]
        scale = gamma / jnp.sqrt(var + eps)             # (Ch,)
        w_f = jnp.transpose(w, (0, 2, 3, 1)).reshape(ch, 9 * Cin)  # (ky,kx,ci)
        w_f = (w_f * scale[:, None]).astype(jnp.float32)
        shift = (b * scale + beta - mean * scale).astype(jnp.float32)
        return w_f, shift.reshape(ch, 1)

    folded = [fold(p) for p in params]
    w_all = jnp.stack([f[0] for f in folded], axis=0)   # (nD, Ch, 9*Cin)
    sh_all = jnp.stack([f[1] for f in folded], axis=0)  # (nD, Ch, 1)
    Ch = w_all.shape[1]
    Cout = nD * Ch

    # ---- single padded input, flattened into non-overlapping halo slabs ----
    x_p = jnp.pad(x_nchw.astype(jnp.float32),
                  ((0, 0), (0, 0), (dm, dm), (dm, dm)))            # (N,Cin,Hp,Wp)
    slabs = jnp.stack(
        [x_p[:, :, t * tH:t * tH + tH + 2 * dm, :] for t in range(nT)],
        axis=1)                                                     # (N,nT,Cin,tH+2dm,Wp)
    slabs = slabs.reshape(N, nT, Cin, (tH + 2 * dm) * Wp)
    slabs = jnp.pad(slabs, ((0, 0), (0, 0), (0, 0),
                            (0, Lt - (tH + 2 * dm) * Wp)))          # (N,nT,Cin,Lt)

    kernel = functools.partial(_cat_dil_conv_kernel, dilations=tuple(dilations),
                               dm=dm, Wp=Wp, Qt=Qt, ch=Ch, cin=Cin)

    out_k = pl.pallas_call(
        kernel,
        out_shape=jax.ShapeDtypeStruct((N, nT, Cout, Qt), jnp.float32),
        grid=(N, nT),
        in_specs=[
            pl.BlockSpec((1, 1, Cin, Lt), lambda n, t: (n, t, 0, 0)),
            pl.BlockSpec((nD, Ch, 9 * Cin), lambda n, t: (0, 0, 0)),
            pl.BlockSpec((nD, Ch, 1), lambda n, t: (0, 0, 0)),
        ],
        out_specs=pl.BlockSpec((1, 1, Cout, Qt), lambda n, t: (n, t, 0, 0)),
        scratch_shapes=[pltpu.VMEM((9 * Cin, Qt), jnp.float32)],
        compiler_params=pltpu.CompilerParams(
            dimension_semantics=("parallel", "parallel")),
    )(slabs, w_all, sh_all)

    # Crop the garbage columns / lane padding and fold the row tiles back.
    o = out_k[:, :, :, :tH * Wp].reshape(N, nT, Cout, tH, Wp)[:, :, :, :, :W]
    return jnp.transpose(o, (0, 2, 1, 3, 4)).reshape(N, Cout, H, W)   # NCHW


def _reference(x_nchw, params, dilations=(1, 2), eps=BN_EPS):
    """Pure-JAX reference (lax conv) matching the PyTorch module in eval-mode BN."""
    outs = []
    for (w, b, gamma, beta, mean, var), d in zip(params, dilations):
        y = lax.conv_general_dilated(
            x_nchw.astype(jnp.float32), w.astype(jnp.float32),
            window_strides=(1, 1), padding=[(d, d), (d, d)],
            rhs_dilation=(d, d),
            dimension_numbers=('NCHW', 'OIHW', 'NCHW'))
        y = y + b[None, :, None, None]
        y = (y - mean[None, :, None, None]) / jnp.sqrt(var + eps)[None, :, None, None]
        y = y * gamma[None, :, None, None] + beta[None, :, None, None]
        outs.append(jnp.maximum(y, 0.0))
    return jnp.concatenate(outs, axis=1)


def _make_params(key, in_channel, out_channel, dilations):
    """Deterministic synthetic parameters (shapes match the PyTorch module __init__)."""
    ch = out_channel // len(dilations)
    params = []
    for i in range(len(dilations)):
        k = jax.random.fold_in(key, i)
        kw, kb, kg, kbeta, km, kv = jax.random.split(k, 6)
        w = 0.1 * jax.random.normal(kw, (ch, in_channel, 3, 3), jnp.float32)
        b = 0.1 * jax.random.normal(kb, (ch,), jnp.float32)
        gamma = 1.0 + 0.1 * jax.random.normal(kg, (ch,), jnp.float32)
        beta = 0.1 * jax.random.normal(kbeta, (ch,), jnp.float32)
        mean = 0.1 * jax.random.normal(km, (ch,), jnp.float32)
        var = 1.0 + 0.1 * jax.random.uniform(kv, (ch,), jnp.float32)
        params.append((w, b, gamma, beta, mean, var))
    return params


if __name__ == "__main__":
    key = jax.random.PRNGKey(0)
    kx, kp = jax.random.split(key)

    N, Cin, H, W = 2, 4, 16, 16
    Cout = 8
    dilations = (1, 2)

    x = jax.random.normal(kx, (N, Cin, H, W), jnp.float32)          # NCHW, like PyTorch
    params = _make_params(kp, Cin, Cout, dilations)

    out = cat_dilation_conv2d_batch_relu(x, params, dilations)
    out = jax.block_until_ready(out)

    ref = jax.block_until_ready(_reference(x, params, dilations))
    assert out.shape == (N, Cout, H, W), out.shape
    np.testing.assert_allclose(np.asarray(out), np.asarray(ref), rtol=1e-4, atol=1e-4)

    print("KERNEL_OK")
</pallas_src>

<mosaic_0001>
module attributes {stable_mosaic.version = 11 : i64} {
  func.func @_cat_dil_conv_kernel(%arg0: i32, %arg1: i32, %arg2: memref<1x1x4x384xf32, #tpu.memory_space<vmem>>, %arg3: memref<2x4x36xf32, #tpu.memory_space<vmem>>, %arg4: memref<2x4x1xf32, #tpu.memory_space<vmem>>, %arg5: memref<1x1x8x256xf32, #tpu.memory_space<vmem>>, %arg6: memref<36x256xf32, #tpu.memory_space<vmem>>) attributes {dimension_semantics = [#tpu.dimension_semantics<parallel>, #tpu.dimension_semantics<parallel>], iteration_bounds = array<i64: 2, 2>, scalar_prefetch = 0 : i64, scratch_operands = 1 : i64, tpu.core_type = #tpu.core_type<tc>, window_params = [{transform_indices = @transform_0, window_bounds = array<i64: 1, 1, 4, 384>}, {pipeline_mode = #tpu.pipeline_mode<synchronous>, transform_indices = @transform_1, window_bounds = array<i64: 2, 4, 36>}, {pipeline_mode = #tpu.pipeline_mode<synchronous>, transform_indices = @transform_2, window_bounds = array<i64: 2, 4, 1>}, {transform_indices = @transform_3, window_bounds = array<i64: 1, 1, 8, 256>}]} {
    %c0 = arith.constant 0 : index
    %c0_0 = arith.constant 0 : index
    %c0_1 = arith.constant 0 : index
    %c0_2 = arith.constant 0 : index
    %0 = vector.load %arg2[%c0, %c0_0, %c0_1, %c0_2] : memref<1x1x4x384xf32, #tpu.memory_space<vmem>>, vector<1x1x4x384xf32>
    %1 = vector.shape_cast %0 : vector<1x1x4x384xf32> to vector<4x384xf32>
    %2 = vector.extract_strided_slice %1 {offsets = [0, 21], sizes = [4, 256], strides = [1, 1]} : vector<4x384xf32> to vector<4x256xf32>
    %c0_3 = arith.constant 0 : index
    %c0_4 = arith.constant 0 : index
    %3 = vector.load %arg6[%c0_3, %c0_4] : memref<36x256xf32, #tpu.memory_space<vmem>>, vector<4x256xf32>
    tpu.vector_store %arg6[%c0_3, %c0_4], %2 {strides = array<i32>} : memref<36x256xf32, #tpu.memory_space<vmem>>, vector<4x256xf32>,
    %4 = vector.extract_strided_slice %1 {offsets = [0, 22], sizes = [4, 256], strides = [1, 1]} : vector<4x384xf32> to vector<4x256xf32>
    %c4 = arith.constant 4 : index
    %c0_5 = arith.constant 0 : index
    %5 = vector.load %arg6[%c4, %c0_5] : memref<36x256xf32, #tpu.memory_space<vmem>>, vector<4x256xf32>
    tpu.vector_store %arg6[%c4, %c0_5], %4 {strides = array<i32>} : memref<36x256xf32, #tpu.memory_space<vmem>>, vector<4x256xf32>,
    %6 = vector.extract_strided_slice %1 {offsets = [0, 23], sizes = [4, 256], strides = [1, 1]} : vector<4x384xf32> to vector<4x256xf32>
    %c8 = arith.constant 8 : index
    %c0_6 = arith.constant 0 : index
    %7 = vector.load %arg6[%c8, %c0_6] : memref<36x256xf32, #tpu.memory_space<vmem>>, vector<4x256xf32>
    tpu.vector_store %arg6[%c8, %c0_6], %6 {strides = array<i32>} : memref<36x256xf32, #tpu.memory_space<vmem>>, vector<4x256xf32>,
    %8 = vector.extract_strided_slice %1 {offsets = [0, 41], sizes = [4, 256], strides = [1, 1]} : vector<4x384xf32> to vector<4x256xf32>
    %c12 = arith.constant 12 : index
    %c0_7 = arith.constant 0 : index
    %9 = vector.load %arg6[%c12, %c0_7] : memref<36x256xf32, #tpu.memory_space<vmem>>, vector<4x256xf32>
    tpu.vector_store %arg6[%c12, %c0_7], %8 {strides = array<i32>} : memref<36x256xf32, #tpu.memory_space<vmem>>, vector<4x256xf32>,
    %10 = vector.extract_strided_slice %1 {offsets = [0, 42], sizes = [4, 256], strides = [1, 1]} : vector<4x384xf32> to vector<4x256xf32>
    %c16 = arith.constant 16 : index
    %c0_8 = arith.constant 0 : index
    %11 = vector.load %arg6[%c16, %c0_8] : memref<36x256xf32, #tpu.memory_space<vmem>>, vector<4x256xf32>
    tpu.vector_store %arg6[%c16, %c0_8], %10 {strides = array<i32>} : memref<36x256xf32, #tpu.memory_space<vmem>>, vector<4x256xf32>,
    %12 = vector.extract_strided_slice %1 {offsets = [0, 43], sizes = [4, 256], strides = [1, 1]} : vector<4x384xf32> to vector<4x256xf32>
    %c20 = arith.constant 20 : index
    %c0_9 = arith.constant 0 : index
    %13 = vector.load %arg6[%c20, %c0_9] : memref<36x256xf32, #tpu.memory_space<vmem>>, vector<4x256xf32>
    tpu.vector_store %arg6[%c20, %c0_9], %12 {strides = array<i32>} : memref<36x256xf32, #tpu.memory_space<vmem>>, vector<4x256xf32>,
    %14 = vector.extract_strided_slice %1 {offsets = [0, 61], sizes = [4, 256], strides = [1, 1]} : vector<4x384xf32> to vector<4x256xf32>
    %c24 = arith.constant 24 : index
    %c0_10 = arith.constant 0 : index
    %15 = vector.load %arg6[%c24, %c0_10] : memref<36x256xf32, #tpu.memory_space<vmem>>, vector<4x256xf32>
    tpu.vector_store %arg6[%c24, %c0_10], %14 {strides = array<i32>} : memref<36x256xf32, #tpu.memory_space<vmem>>, vector<4x256xf32>,
    %16 = vector.extract_strided_slice %1 {offsets = [0, 62], sizes = [4, 256], strides = [1, 1]} : vector<4x384xf32> to vector<4x256xf32>
    %c28 = arith.constant 28 : index
    %c0_11 = arith.constant 0 : index
    %17 = vector.load %arg6[%c28, %c0_11] : memref<36x256xf32, #tpu.memory_space<vmem>>, vector<4x256xf32>
    tpu.vector_store %arg6[%c28, %c0_11], %16 {strides = array<i32>} : memref<36x256xf32, #tpu.memory_space<vmem>>, vector<4x256xf32>,
    %18 = vector.extract_strided_slice %1 {offsets = [0, 63], sizes = [4, 256], strides = [1, 1]} : vector<4x384xf32> to vector<4x256xf32>
    %c32 = arith.constant 32 : index
    %c0_12 = arith.constant 0 : index
    %19 = vector.load %arg6[%c32, %c0_12] : memref<36x256xf32, #tpu.memory_space<vmem>>, vector<4x256xf32>
    tpu.vector_store %arg6[%c32, %c0_12], %18 {strides = array<i32>} : memref<36x256xf32, #tpu.memory_space<vmem>>, vector<4x256xf32>,
    %c0_13 = arith.constant 0 : index
    %c0_14 = arith.constant 0 : index
    %c0_15 = arith.constant 0 : index
    %20 = vector.load %arg3[%c0_13, %c0_14, %c0_15] : memref<2x4x36xf32, #tpu.memory_space<vmem>>, vector<1x4x36xf32>
    %21 = vector.shape_cast %20 : vector<1x4x36xf32> to vector<4x36xf32>
    %c0_16 = arith.constant 0 : index
    %c0_17 = arith.constant 0 : index
    %22 = vector.load %arg6[%c0_16, %c0_17] : memref<36x256xf32, #tpu.memory_space<vmem>>, vector<36x256xf32>
    %cst = arith.constant dense<0.000000e+00> : vector<4x256xf32>
    %23 = tpu.matmul %21, %22, %cst {dimension_numbers = #tpu.dot_dimension_numbers<[1], [0], [0], [1], [0, 0, 1, 1], [], []>} : vector<4x36xf32>, vector<36x256xf32>, vector<4x256xf32> -> vector<4x256xf32>
    %c0_18 = arith.constant 0 : index
    %c0_19 = arith.constant 0 : index
    %c0_20 = arith.constant 0 : index
    %24 = vector.load %arg4[%c0_18, %c0_19, %c0_20] : memref<2x4x1xf32, #tpu.memory_space<vmem>>, vector<1x4x1xf32>
    %25 = vector.shape_cast %24 : vector<1x4x1xf32> to vector<4x1xf32>
    %26 = vector.broadcast %25 : vector<4x1xf32> to vector<4x256xf32>
    %27 = arith.addf %23, %26 : vector<4x256xf32>
    %cst_21 = arith.constant 0.000000e+00 : f32
    %28 = vector.broadcast %cst_21 : f32 to vector<4x256xf32>
    %29 = arith.maximumf %27, %28 : vector<4x256xf32>
    %c0_22 = arith.constant 0 : index
    %c0_23 = arith.constant 0 : index
    %c0_24 = arith.constant 0 : index
    %c0_25 = arith.constant 0 : index
    %30 = vector.load %arg5[%c0_22, %c0_23, %c0_24, %c0_25] : memref<1x1x8x256xf32, #tpu.memory_space<vmem>>, vector<1x1x4x256xf32>
    %31 = vector.shape_cast %30 : vector<1x1x4x256xf32> to vector<4x256xf32>
    %32 = vector.shape_cast %29 : vector<4x256xf32> to vector<1x1x4x256xf32>
    tpu.vector_store %arg5[%c0_22, %c0_23, %c0_24, %c0_25], %32 {strides = array<i32>} : memref<1x1x8x256xf32, #tpu.memory_space<vmem>>, vector<1x1x4x256xf32>,
    %33 = vector.extract_strided_slice %1 {offsets = [0, 0], sizes = [4, 256], strides = [1, 1]} : vector<4x384xf32> to vector<4x256xf32>
    %c0_26 = arith.constant 0 : index
    %c0_27 = arith.constant 0 : index
    %34 = vector.load %arg6[%c0_26, %c0_27] : memref<36x256xf32, #tpu.memory_space<vmem>>, vector<4x256xf32>
    tpu.vector_store %arg6[%c0_26, %c0_27], %33 {strides = array<i32>} : memref<36x256xf32, #tpu.memory_space<vmem>>, vector<4x256xf32>,
    %35 = vector.extract_strided_slice %1 {offsets = [0, 2], sizes = [4, 256], strides = [1, 1]} : vector<4x384xf32> to vector<4x256xf32>
    %c4_28 = arith.constant 4 : index
    %c0_29 = arith.constant 0 : index
    %36 = vector.load %arg6[%c4_28, %c0_29] : memref<36x256xf32, #tpu.memory_space<vmem>>, vector<4x256xf32>
    tpu.vector_store %arg6[%c4_28, %c0_29], %35 {strides = array<i32>} : memref<36x256xf32, #tpu.memory_space<vmem>>, vector<4x256xf32>,
    %37 = vector.extract_strided_slice %1 {offsets = [0, 4], sizes = [4, 256], strides = [1, 1]} : vector<4x384xf32> to vector<4x256xf32>
    %c8_30 = arith.constant 8 : index
    %c0_31 = arith.constant 0 : index
    %38 = vector.load %arg6[%c8_30, %c0_31] : memref<36x256xf32, #tpu.memory_space<vmem>>, vector<4x256xf32>
    tpu.vector_store %arg6[%c8_30, %c0_31], %37 {strides = array<i32>} : memref<36x256xf32, #tpu.memory_space<vmem>>, vector<4x256xf32>,
    %39 = vector.extract_strided_slice %1 {offsets = [0, 40], sizes = [4, 256], strides = [1, 1]} : vector<4x384xf32> to vector<4x256xf32>
    %c12_32 = arith.constant 12 : index
    %c0_33 = arith.constant 0 : index
    %40 = vector.load %arg6[%c12_32, %c0_33] : memref<36x256xf32, #tpu.memory_space<vmem>>, vector<4x256xf32>
    tpu.vector_store %arg6[%c12_32, %c0_33], %39 {strides = array<i32>} : memref<36x256xf32, #tpu.memory_space<vmem>>, vector<4x256xf32>,
    %41 = vector.extract_strided_slice %1 {offsets = [0, 42], sizes = [4, 256], strides = [1, 1]} : vector<4x384xf32> to vector<4x256xf32>
    %c16_34 = arith.constant 16 : index
    %c0_35 = arith.constant 0 : index
    %42 = vector.load %arg6[%c16_34, %c0_35] : memref<36x256xf32, #tpu.memory_space<vmem>>, vector<4x256xf32>
    tpu.vector_store %arg6[%c16_34, %c0_35], %41 {strides = array<i32>} : memref<36x256xf32, #tpu.memory_space<vmem>>, vector<4x256xf32>,
    %43 = vector.extract_strided_slice %1 {offsets = [0, 44], sizes = [4, 256], strides = [1, 1]} : vector<4x384xf32> to vector<4x256xf32>
    %c20_36 = arith.constant 20 : index
    %c0_37 = arith.constant 0 : index
    %44 = vector.load %arg6[%c20_36, %c0_37] : memref<36x256xf32, #tpu.memory_space<vmem>>, vector<4x256xf32>
    tpu.vector_store %arg6[%c20_36, %c0_37], %43 {strides = array<i32>} : memref<36x256xf32, #tpu.memory_space<vmem>>, vector<4x256xf32>,
    %45 = vector.extract_strided_slice %1 {offsets = [0, 80], sizes = [4, 256], strides = [1, 1]} : vector<4x384xf32> to vector<4x256xf32>
    %c24_38 = arith.constant 24 : index
    %c0_39 = arith.constant 0 : index
    %46 = vector.load %arg6[%c24_38, %c0_39] : memref<36x256xf32, #tpu.memory_space<vmem>>, vector<4x256xf32>
    tpu.vector_store %arg6[%c24_38, %c0_39], %45 {strides = array<i32>} : memref<36x256xf32, #tpu.memory_space<vmem>>, vector<4x256xf32>,
    %47 = vector.extract_strided_slice %1 {offsets = [0, 82], sizes = [4, 256], strides = [1, 1]} : vector<4x384xf32> to vector<4x256xf32>
    %c28_40 = arith.constant 28 : index
    %c0_41 = arith.constant 0 : index
    %48 = vector.load %arg6[%c28_40, %c0_41] : memref<36x256xf32, #tpu.memory_space<vmem>>, vector<4x256xf32>
    tpu.vector_store %arg6[%c28_40, %c0_41], %47 {strides = array<i32>} : memref<36x256xf32, #tpu.memory_space<vmem>>, vector<4x256xf32>,
    %49 = vector.extract_strided_slice %1 {offsets = [0, 84], sizes = [4, 256], strides = [1, 1]} : vector<4x384xf32> to vector<4x256xf32>
    %c32_42 = arith.constant 32 : index
    %c0_43 = arith.constant 0 : index
    %50 = vector.load %arg6[%c32_42, %c0_43] : memref<36x256xf32, #tpu.memory_space<vmem>>, vector<4x256xf32>
    tpu.vector_store %arg6[%c32_42, %c0_43], %49 {strides = array<i32>} : memref<36x256xf32, #tpu.memory_space<vmem>>, vector<4x256xf32>,
    %c1 = arith.constant 1 : index
    %c0_44 = arith.constant 0 : index
    %c0_45 = arith.constant 0 : index
    %51 = vector.load %arg3[%c1, %c0_44, %c0_45] : memref<2x4x36xf32, #tpu.memory_space<vmem>>, vector<1x4x36xf32>
    %52 = vector.shape_cast %51 : vector<1x4x36xf32> to vector<4x36xf32>
    %c0_46 = arith.constant 0 : index
    %c0_47 = arith.constant 0 : index
    %53 = vector.load %arg6[%c0_46, %c0_47] : memref<36x256xf32, #tpu.memory_space<vmem>>, vector<36x256xf32>
    %cst_48 = arith.constant dense<0.000000e+00> : vector<4x256xf32>
    %54 = tpu.matmul %52, %53, %cst_48 {dimension_numbers = #tpu.dot_dimension_numbers<[1], [0], [0], [1], [0, 0, 1, 1], [], []>} : vector<4x36xf32>, vector<36x256xf32>, vector<4x256xf32> -> vector<4x256xf32>
    %c1_49 = arith.constant 1 : index
    %c0_50 = arith.constant 0 : index
    %c0_51 = arith.constant 0 : index
    %55 = vector.load %arg4[%c1_49, %c0_50, %c0_51] : memref<2x4x1xf32, #tpu.memory_space<vmem>>, vector<1x4x1xf32>
    %56 = vector.shape_cast %55 : vector<1x4x1xf32> to vector<4x1xf32>
    %57 = vector.broadcast %56 : vector<4x1xf32> to vector<4x256xf32>
    %58 = arith.addf %54, %57 : vector<4x256xf32>
    %cst_52 = arith.constant 0.000000e+00 : f32
    %59 = vector.broadcast %cst_52 : f32 to vector<4x256xf32>
    %60 = arith.maximumf %58, %59 : vector<4x256xf32>
    %c0_53 = arith.constant 0 : index
    %c0_54 = arith.constant 0 : index
    %c4_55 = arith.constant 4 : index
    %c0_56 = arith.constant 0 : index
    %61 = vector.load %arg5[%c0_53, %c0_54, %c4_55, %c0_56] : memref<1x1x8x256xf32, #tpu.memory_space<vmem>>, vector<1x1x4x256xf32>
    %62 = vector.shape_cast %61 : vector<1x1x4x256xf32> to vector<4x256xf32>
    %63 = vector.shape_cast %60 : vector<4x256xf32> to vector<1x1x4x256xf32>
    tpu.vector_store %arg5[%c0_53, %c0_54, %c4_55, %c0_56], %63 {strides = array<i32>} : memref<1x1x8x256xf32, #tpu.memory_space<vmem>>, vector<1x1x4x256xf32>,
    return
  }
  func.func @transform_0(%arg0: i32, %arg1: i32) -> (i32, i32, i32, i32) {
    %c0_i32 = arith.constant 0 : i32
    %c0_i32_0 = arith.constant 0 : i32
    %c0_i32_1 = arith.constant 0 : i32
    return %arg0, %arg1, %c0_i32, %c0_i32_0 : i32, i32, i32, i32
  }
  func.func @transform_1(%arg0: i32, %arg1: i32) -> (i32, i32, i32) {
    %c0_i32 = arith.constant 0 : i32
    %c0_i32_0 = arith.constant 0 : i32
    %c0_i32_1 = arith.constant 0 : i32
    %c0_i32_2 = arith.constant 0 : i32
    return %c0_i32, %c0_i32_0, %c0_i32_1 : i32, i32, i32
  }
  func.func @transform_2(%arg0: i32, %arg1: i32) -> (i32, i32, i32) {
    %c0_i32 = arith.constant 0 : i32
    %c0_i32_0 = arith.constant 0 : i32
    %c0_i32_1 = arith.constant 0 : i32
    %c0_i32_2 = arith.constant 0 : i32
    return %c0_i32, %c0_i32_0, %c0_i32_1 : i32, i32, i32
  }
  func.func @transform_3(%arg0: i32, %arg1: i32) -> (i32, i32, i32, i32) {
    %c0_i32 = arith.constant 0 : i32
    %c0_i32_0 = arith.constant 0 : i32
    %c0_i32_1 = arith.constant 0 : i32
    return %arg0, %arg1, %c0_i32, %c0_i32_0 : i32, i32, i32, i32
  }
}

</mosaic_0001>

<llo_original>
// kernel: tpu_custom_call.1
$region0: #{tpu_custom_call.1}
  #allocation0 [shape = 'u32[]', space=smem, size = 0x4, offset = 0x4, fixed_abs, tag = 'smem constant byte address 0x4 - core index']
  #allocation1 [shape = 'u32[144,128]{1,0:T(1,128)}', space=vmem, size = 0x12000, scoped, tag = 'internal scratch']
  #allocation2 [shape = 'f32[36,256]{1,0:T(8,128)}', space=vmem, size = 0xa000, scoped, tag = 'scratch operand']
  %s0 = inlined_call_operand.hbm [shape: f32[2,2,4,384], index: 0, kind: input, shape index: {}]
  %s1 = inlined_call_operand.vmem [shape: f32[2,4,36], index: 1, kind: input, shape index: {}]
  %s2 = inlined_call_operand.vmem [shape: f32[2,4,1], index: 2, kind: input, shape index: {}]
  %s3 = inlined_call_operand.hbm [shape: f32[2,2,8,256], index: 3, kind: output, shape index: {}]
  %s4 = sld [smem:[#allocation0]]
  $region49: #{tpu_custom_call.1} parent=0
    _
  %s6 = ssub.s32 1, %s4
  %s7 = scalar_select 0, %s6, %s4
  $region1: #{tpu_custom_call.1} parent=0
    #allocation3 [shape = 'u8[12288]{0}', space=vmem, size = 0x3000, scoped, tag = 'input window, operand 0']
    #allocation4 [shape = 's32[2]{0}', space=sflag, size = 0x8, scoped, tag = 'scoped memory for tpu_custom_call.1']
    #allocation5 [shape = 's32[2]{0}', space=sflag, size = 0x8, scoped, tag = 'scoped memory for tpu_custom_call.1']
    #allocation6 [shape = 'u8[16384]{0}', space=vmem, size = 0x4000, scoped, tag = 'output window, operand 0']
    %8 = vsyncpa [#allocation4], 0
    %s9 = scalar_lea.sflag [#allocation4], 1
    %10 = vsyncpa %s9, 0
    %11 = vsyncpa [#allocation5], 0
    %s12 = scalar_lea.sflag [#allocation5], 1
    %13 = vsyncpa %s12, 0
    loop: start=0, step=1, limit=6
    $region2: #{tpu_custom_call.1} parent=1 // loop_pre_header
      _
    $region3: #{tpu_custom_call.1} parent=1 // loop_header
      %s15 = sphi 0, %s19
      %p16 = scmp.ge.s32.totalorder %s15, 6
      %s22 = sphi 0, %s34
      %s23 = sphi 0, %s30
      %s24 = sphi 0, %s22
      %s25 = sphi 0, %s23
      %s26 = sphi 0, %s24
      %s27 = sphi 0, %s25
      %s39 = sphi 0, %s41
      %s42 = sphi 0, %s39
      %s43 = sphi 0, %s42
      %s59 = sphi 0, %s43
      %s63 = sphi 0, %s63
      %s65 = sphi 0, %s63
      %s66 = sphi 0, %s65
      %s80 = sphi 0, %s66
      %s84 = sphi 0, %s84
      %s86 = sphi 0, %s84
      %s87 = sphi 0, %s86
      %s101 = sphi 0, %s87
      %s109 = sphi 0, %s111
      %s112 = sphi 0, %s109
      %s113 = sphi 0, %s112
      %s129 = sphi 0, %s113
    $region4: #{tpu_custom_call.1} parent=1 // loop_header_branch
      %18 = sbr.rel (%p16) target = $region8
    $region5: #{tpu_custom_call.1} parent=1 // loop_body
      %s20 = ssub.s32 %s15, 1
      %s21 = ssub.s32 %s15, 2
      %s28 = sadd.s32 1, %s23
      %p29 = scmp.ge.s32.totalorder %s28, 2
      %s30 = scalar_select %p29, 0, %s28
      %s31 = sadd.s32 1, %s22
      %s32 = scalar_select %p29, %s31, %s22
      %p33 = scmp.ge.s32.totalorder %s32, 2
      %s34 = scalar_select %p33, 0, %s32
      %s35 = ssub.s32 %s22, %s34
      %s36 = ssub.s32 %s23, %s30
      %s37 = sor.u32 %s35, %s36
      %p38 = scmp.eq.s32.totalorder %s37, 0
      %s40 = sadd.s32 %s39, 1
      %s41 = scalar_select %p38, %s39, %s40
      %p44 = pneg %p38
      %p45 = scmp.eq.s32.totalorder %s15, 3
      %p46 = por %p44, %p45
      %p47 = scmp.ne.s32.totalorder %s39, %s42
      %p48 = scmp.eq.s32.totalorder %s15, 0
      %p49 = por %p47, %p48
      %p50 = scmp.ne.s32.totalorder %s39, %s42
      %p51 = scmp.eq.s32.totalorder %s20, 3
      %p52 = por %p50, %p51
      %p53 = scmp.ne.s32.totalorder %s42, %s43
      %p54 = scmp.eq.s32.totalorder %s20, 0
      %p55 = por %p53, %p54
      %p56 = scmp.ne.s32.totalorder %s42, %s43
      %p57 = scmp.eq.s32.totalorder %s21, 3
      %p58 = por %p56, %p57
      %p60 = scmp.ne.s32.totalorder %s43, %s59
      %p61 = scmp.eq.s32.totalorder %s21, 0
      %p62 = por %p60, %p61
      %s64 = sadd.s32 %s63, 1
      %p67 = scmp.eq.s32.totalorder %s15, 3
      %p68 = scmp.ne.s32.totalorder %s63, %s65
      %p69 = scmp.eq.s32.totalorder %s15, 0
      %p70 = por %p68, %p69
      %p71 = scmp.ne.s32.totalorder %s63, %s65
      %p72 = scmp.eq.s32.totalorder %s20, 3
      %p73 = por %p71, %p72
      %p74 = scmp.ne.s32.totalorder %s65, %s66
      %p75 = scmp.eq.s32.totalorder %s20, 0
      %p76 = por %p74, %p75
      %p77 = scmp.ne.s32.totalorder %s65, %s66
      %p78 = scmp.eq.s32.totalorder %s21, 3
      %p79 = por %p77, %p78
      %p81 = scmp.ne.s32.totalorder %s66, %s80
      %p82 = scmp.eq.s32.totalorder %s21, 0
      %p83 = por %p81, %p82
      %s85 = sadd.s32 %s84, 1
      %p88 = scmp.eq.s32.totalorder %s15, 3
      %p89 = scmp.ne.s32.totalorder %s84, %s86
      %p90 = scmp.eq.s32.totalorder %s15, 0
      %p91 = por %p89, %p90
      %p92 = scmp.ne.s32.totalorder %s84, %s86
      %p93 = scmp.eq.s32.totalorder %s20, 3
      %p94 = por %p92, %p93
      %p95 = scmp.ne.s32.totalorder %s86, %s87
      %p96 = scmp.eq.s32.totalorder %s20, 0
      %p97 = por %p95, %p96
      %p98 = scmp.ne.s32.totalorder %s86, %s87
      %p99 = scmp.eq.s32.totalorder %s21, 3
      %p100 = por %p98, %p99
      %p102 = scmp.ne.s32.totalorder %s87, %s101
      %p103 = scmp.eq.s32.totalorder %s21, 0
      %p104 = por %p102, %p103
      %s105 = ssub.s32 %s22, %s34
      %s106 = ssub.s32 %s23, %s30
      %s107 = sor.u32 %s105, %s106
      %p108 = scmp.eq.s32.totalorder %s107, 0
      %s110 = sadd.s32 %s109, 1
      %s111 = scalar_select %p108, %s109, %s110
      %p114 = pneg %p108
      %p115 = scmp.eq.s32.totalorder %s15, 3
      %p116 = por %p114, %p115
      %p117 = scmp.ne.s32.totalorder %s109, %s112
      %p118 = scmp.eq.s32.totalorder %s15, 0
      %p119 = por %p117, %p118
      %p120 = scmp.ne.s32.totalorder %s109, %s112
      %p121 = scmp.eq.s32.totalorder %s20, 3
      %p122 = por %p120, %p121
      %p123 = scmp.ne.s32.totalorder %s112, %s113
      %p124 = scmp.eq.s32.totalorder %s20, 0
      %p125 = por %p123, %p124
      %p126 = scmp.ne.s32.totalorder %s112, %s113
      %p127 = scmp.eq.s32.totalorder %s21, 3
      %p128 = por %p126, %p127
      %p130 = scmp.ne.s32.totalorder %s113, %s129
      %p131 = scmp.eq.s32.totalorder %s21, 0
      %p132 = por %p130, %p131
      %p133 = scmp.le.s32.totalorder 1, %s15
      %p134 = scmp.lt.s32.totalorder %s15, 5
      %p135 = pnand %p133, %p134
      %p136 = pneg %p135
      // Predicated region
      $region9: #{tpu_custom_call.1} parent=5 // pred_check
        _
      $region10: #{tpu_custom_call.1} parent=5 // pred_check_branch
        %138 = sbr.rel (%p135) target = $region12
      $region11: #{tpu_custom_call.1} parent=5 // pred_region
        %s139 = ssub.s32 %s15, 1
        // Predicated region
        $region13: #{tpu_custom_call.1} parent=11 // pred_check
          %p140 = pneg %p76
        $region14: #{tpu_custom_call.1} parent=11 // pred_check_branch
          %142 = sbr.rel (%p140) target = $region16
        $region15: #{tpu_custom_call.1} parent=11 // pred_region
          _
        $region16: #{tpu_custom_call.1} parent=11 // pred_fallthru
          _
        // Predicated region
        $region17: #{tpu_custom_call.1} parent=11 // pred_check
          %p143 = pneg %p97
        $region18: #{tpu_custom_call.1} parent=11 // pred_check_branch
          %145 = sbr.rel (%p143) target = $region20
        $region19: #{tpu_custom_call.1} parent=11 // pred_region
          _
        $region20: #{tpu_custom_call.1} parent=11 // pred_fallthru
          _
      $region12: #{tpu_custom_call.1} parent=5 // pred_fallthru
        _
      %p146 = scmp.lt.s32.totalorder %s15, 4
      // Predicated region
      $region21: #{tpu_custom_call.1} parent=5 // pred_check
        %p147 = pneg %p146
      $region22: #{tpu_custom_call.1} parent=5 // pred_check_branch
        %149 = sbr.rel (%p147) target = $region24
      $region23: #{tpu_custom_call.1} parent=5 // pred_region
        // Predicated region
        $region25: #{tpu_custom_call.1} parent=23 // pred_check
          %p150 = pneg %p49
        $region26: #{tpu_custom_call.1} parent=23 // pred_check_branch
          %152 = sbr.rel (%p150) target = $region28
        $region27: #{tpu_custom_call.1} parent=23 // pred_region
          %s153 = sand.u32 %s39, 1
          %s154 = scalar_lea.sflag [#allocation4], %s153
          %s155 = sand.u32 %s39, 1
          %s156 = smul.addr %s155, 12
          %s157 = scalar_lea.vmem [#allocation3], %s156
          %s159 = ssub.s32 192, 192
          %160 = vsyncadd %s154, %s159
          %s161 = smul.addr %s23, 3
          %s162 = smul.addr %s22, 6
          %s163 = sadd.s32 %s161, %s162
          %s164 = smul.addr %s163, 64
          %s165 = scalar_lea.hbm %s0, %s164
          %s167 = sshll.u32 %s157, 4
          %s168 = int_to_ptr.vmem [resolvable:$true] %s167
          %170 = dma.hbm_to_vmem [thread:$0]  %s165, 192, %s168, %s154
        $region28: #{tpu_custom_call.1} parent=23 // pred_fallthru
          _
      $region24: #{tpu_custom_call.1} parent=5 // pred_fallthru
        _
      %p171 = scmp.le.s32.totalorder 1, %s15
      %p172 = scmp.lt.s32.totalorder %s15, 5
      %p173 = pnand %p171, %p172
      %p174 = pneg %p173
      // Predicated region
      $region29: #{tpu_custom_call.1} parent=5 // pred_check
        _
      $region30: #{tpu_custom_call.1} parent=5 // pred_check_branch
        %176 = sbr.rel (%p173) target = $region32
      $region31: #{tpu_custom_call.1} parent=5 // pred_region
        %s177 = ssub.s32 %s15, 1
        %s178 = sand.u32 %s42, 1
        %s179 = scalar_lea.sflag [#allocation4], %s178
        %s180 = sand.u32 %s42, 1
        %s181 = smul.addr %s180, 12
        %s182 = scalar_lea.vmem [#allocation3], %s181
        // Predicated region
        $region33: #{tpu_custom_call.1} parent=31 // pred_check
          %p183 = pneg %p55
        $region34: #{tpu_custom_call.1} parent=31 // pred_check_branch
          %185 = sbr.rel (%p183) target = $region36
        $region35: #{tpu_custom_call.1} parent=31 // pred_region
          %186 = dma.done %s179, 192
        $region36: #{tpu_custom_call.1} parent=31 // pred_fallthru
          _
        %s187 = sand.u32 %s42, 1
        %s188 = scalar_lea.sflag [#allocation4], %s187
        %s189 = sand.u32 %s42, 1
        %s190 = smul.addr %s189, 12
        %s191 = scalar_lea.vmem [#allocation3], %s190
        %p192 = pneg %p55
        %p193 = pneg %p52
        %p194 = pneg %p76
        %p195 = pneg %p73
        %p196 = pneg %p97
        %p197 = pneg %p94
        %p198 = pneg %p125
        %p199 = pneg %p122
        %s200 = sand.u32 %s112, 1
        %s201 = scalar_lea.sflag [#allocation5], %s200
        %s202 = sand.u32 %s112, 1
        %s203 = smul.addr %s202, 16
        %s204 = scalar_lea.vmem [#allocation6], %s203
        %v205 = vld [vmem:[%s182] sm:$0xff]
        %v206 = vld [vmem:[%s182 + $0x8] sm:$0xf]
        %v209 = vcombine.high %v205, %v205
        %210 = vrot.lane.b32.xlu0 %v205, 107
        %v211 = vpop.permute.xlu0 %210
        %212 = vrot.lane.b32.xlu0 %v209, 107
        %v213 = vpop.permute.xlu0 %212
        %214 = vrot.lane.b32.xlu0 %v206, 107
        %v215 = vpop.permute.xlu0 %214
        %vm216 = vcmask 875520
        %v217 = vsel %vm216, %v211, %v213
        %v218 = vsel %vm216, %v213, %v215
        %221 = vst [vmem:[#allocation2] sm:$0xf] %v217
        %222 = vst [vmem:[#allocation2 + $0x8] sm:$0xf] %v218
        %v223 = vcombine.low %v205, %v205
        %v224 = vcombine.low %v206, %v206
        %225 = vrot.lane.b32.xlu0 %v223, 106
        %v226 = vpop.permute.xlu0 %225
        %227 = vrot.lane.b32.xlu0 %v205, 106
        %v228 = vpop.permute.xlu0 %227
        %229 = vrot.lane.b32.xlu0 %v224, 106
        %v230 = vpop.permute.xlu0 %229
        %vm231 = vcmask 867328
        %v232 = vsel %vm231, %v226, %v228
        %v233 = vsel %vm231, %v228, %v230
        %236 = vst [vmem:[#allocation2] sm:$0xf0] %v232
        %237 = vst [vmem:[#allocation2 + $0x8] sm:$0xf0] %v233
        %238 = vrot.lane.b32.xlu0 %v205, 105
        %v239 = vpop.permute.xlu0 %238
        %240 = vrot.lane.b32.xlu0 %v209, 105
        %v241 = vpop.permute.xlu0 %240
        %242 = vrot.lane.b32.xlu0 %v206, 105
        %v243 = vpop.permute.xlu0 %242
        %vm244 = vcmask 859136
        %v245 = vsel %vm244, %v239, %v241
        %v246 = vsel %vm244, %v241, %v243
        %249 = vst [vmem:[#allocation2 + $0x10] sm:$0xf] %v245
        %250 = vst [vmem:[#allocation2 + $0x18] sm:$0xf] %v246
        %251 = vrot.lane.b32.xlu0 %v223, 87
        %v252 = vpop.permute.xlu0 %251
        %253 = vrot.lane.b32.xlu0 %v205, 87
        %v254 = vpop.permute.xlu0 %253
        %255 = vrot.lane.b32.xlu0 %v224, 87
        %v256 = vpop.permute.xlu0 %255
        %vm257 = vcmask 711680
        %v258 = vsel %vm257, %v252, %v254
        %v259 = vsel %vm257, %v254, %v256
        %262 = vst [vmem:[#allocation2 + $0x10] sm:$0xf0] %v258
        %263 = vst [vmem:[#allocation2 + $0x18] sm:$0xf0] %v259
        %264 = vrot.lane.b32.xlu0 %v205, 86
        %v265 = vpop.permute.xlu0 %264
        %266 = vrot.lane.b32.xlu0 %v209, 86
        %v267 = vpop.permute.xlu0 %266
        %268 = vrot.lane.b32.xlu0 %v206, 86
        %v269 = vpop.permute.xlu0 %268
        %vm270 = vcmask 703488
        %v271 = vsel %vm270, %v265, %v267
        %v272 = vsel %vm270, %v267, %v269
        %275 = vst [vmem:[#allocation2 + $0x20] sm:$0xf] %v271
        %276 = vst [vmem:[#allocation2 + $0x28] sm:$0xf] %v272
        %277 = vrot.lane.b32.xlu0 %v223, 85
        %v278 = vpop.permute.xlu0 %277
        %279 = vrot.lane.b32.xlu0 %v205, 85
        %v280 = vpop.permute.xlu0 %279
        %281 = vrot.lane.b32.xlu0 %v224, 85
        %v282 = vpop.permute.xlu0 %281
        %vm283 = vcmask 695296
        %v284 = vsel %vm283, %v278, %v280
        %v285 = vsel %vm283, %v280, %v282
        %288 = vst [vmem:[#allocation2 + $0x20] sm:$0xf0] %v284
        %289 = vst [vmem:[#allocation2 + $0x28] sm:$0xf0] %v285
        %290 = vrot.lane.b32.xlu0 %v205, 67
        %v291 = vpop.permute.xlu0 %290
        %292 = vrot.lane.b32.xlu0 %v209, 67
        %v293 = vpop.permute.xlu0 %292
        %294 = vrot.lane.b32.xlu0 %v206, 67
        %v295 = vpop.permute.xlu0 %294
        %vm296 = vcmask 547840
        %v297 = vsel %vm296, %v291, %v293
        %v298 = vsel %vm296, %v293, %v295
        %301 = vst [vmem:[#allocation2 + $0x30] sm:$0xf] %v297
        %302 = vst [vmem:[#allocation2 + $0x38] sm:$0xf] %v298
        %303 = vrot.lane.b32.xlu0 %v223, 66
        %v304 = vpop.permute.xlu0 %303
        %305 = vrot.lane.b32.xlu0 %v205, 66
        %v306 = vpop.permute.xlu0 %305
        %307 = vrot.lane.b32.xlu0 %v224, 66
        %v308 = vpop.permute.xlu0 %307
        %vm309 = vcmask 539648
        %v310 = vsel %vm309, %v304, %v306
        %v311 = vsel %vm309, %v306, %v308
        %314 = vst [vmem:[#allocation2 + $0x30] sm:$0xf0] %v310
        %315 = vst [vmem:[#allocation2 + $0x38] sm:$0xf0] %v311
        %316 = vrot.lane.b32.xlu0 %v205, 65
        %v317 = vpop.permute.xlu0 %316
        %318 = vrot.lane.b32.xlu0 %v209, 65
        %v319 = vpop.permute.xlu0 %318
        %320 = vrot.lane.b32.xlu0 %v206, 65
        %v321 = vpop.permute.xlu0 %320
        %vm322 = vcmask 531456
        %v323 = vsel %vm322, %v317, %v319
        %v324 = vsel %vm322, %v319, %v321
        %327 = vst [vmem:[#allocation2 + $0x40] sm:$0xf] %v323
        %328 = vst [vmem:[#allocation2 + $0x48] sm:$0xf] %v324
        %v329 = vld [vmem:[%s1] sm:$0xf]
        %v330 = vld [vmem:[#allocation2] sm:$0xff]
        %v331 = vld [vmem:[#allocation2 + $0x8] sm:$0xff]
        %v332 = vld [vmem:[#allocation2 + $0x10] sm:$0xff]
        %v333 = vld [vmem:[#allocation2 + $0x18] sm:$0xff]
        %v334 = vld [vmem:[#allocation2 + $0x20] sm:$0xff]
        %v335 = vld [vmem:[#allocation2 + $0x28] sm:$0xff]
        %v336 = vld [vmem:[#allocation2 + $0x30] sm:$0xff]
        %v337 = vld [vmem:[#allocation2 + $0x38] sm:$0xff]
        %v338 = vld [vmem:[#allocation2 + $0x40] sm:$0xf]
        %v339 = vld [vmem:[#allocation2 + $0x48] sm:$0xf]
        %v340 = vld [vmem:[%s2] sm:$0xf]
        %342 = vset.pattern.permute.xlu0 0
        %343 = vperm.xlu0 %342, %v340
        %v344 = vpop.permute.xlu0 %343
        %vm346 = vcmask 293888
        %v348 = vsel %vm346, %v329, 0
        %vm350 = vcmask 1043456
        %v352 = vsel %vm350, %v338, 0
        %v355 = vsel %vm350, %v339, 0
        %357 = vmatprep.subr.mxu0 %v331
        %358 = vmatpush1.msra.mxu0 %v330
        %359 = vmatprep.subr.mxu0 %v333
        %360 = vmatpush1.msra.mxu0 %v332
        %361 = vmatprep.subr.mxu0 %v335
        %362 = vmatpush1.msra.mxu0 %v334
        %363 = vmatprep.subr.mxu0 %v337
        %364 = vmatpush1.msra.mxu0 %v336
        %365 = vmatprep.subr.mxu0 %v355
        %366 = vmatpush1.msra.mxu0 %v352
        %367 = vmatprep.subr.mxu0 0.0
        %368 = vmatpush1.msra.mxu0 0.0
        %369 = vmatprep.subr.mxu0 0.0
        %370 = vmatpush1.msra.mxu0 0.0
        %371 = vmatprep.subr.mxu0 0.0
        %372 = vmatpush1.msra.mxu0 0.0
        %373 = vmatprep.subr.mxu0 0.0
        %374 = vmatpush1.msra.mxu0 0.0
        %375 = vmatprep.subr.mxu0 0.0
        %376 = vmatpush1.msra.mxu0 0.0
        %377 = vmatprep.subr.mxu0 0.0
        %378 = vmatpush1.msra.mxu0 0.0
        %379 = vmatprep.subr.mxu0 0.0
        %380 = vmatpush1.msra.mxu0 0.0
        %381 = vmatprep.subr.mxu0 0.0
        %382 = vmatpush1.msra.mxu0 0.0
        %383 = vmatprep.subr.mxu0 0.0
        %384 = vmatpush1.msra.mxu0 0.0
        %385 = vmatprep.subr.mxu0 0.0
        %386 = vmatpush1.msra.mxu0 0.0
        %387 = vmatprep.subr.mxu0 0.0
        %388 = vmatpush1.msra.mxu0 0.0
        %389 = vmatprep.subr.mxu0 0.0
        %390 = vmatpush1.msra.mxu0 0.0
        %391 = vmatprep.subr.mxu0 0.0
        %392 = vmatpush1.msra.mxu0 0.0
        %393 = vmatprep.subr.mxu0 0.0
        %394 = vmatpush1.msra.mxu0 0.0
        %395 = vmatprep.subr.mxu0 0.0
        %396 = vmatpush1.msra.mxu0 0.0
        %397 = vmatprep.subr.mxu0 0.0
        %398 = vmatpush1.msra.mxu0 0.0
        %399 = vmatprep.subr.mxu0 0.0
        %400 = vmatpush1.msra.mxu0 0.0
        %401 = vmatprep.subr.mxu0 0.0
        %402 = vmatpush1.msra.mxu0 0.0
        %403 = vmatprep.subr.mxu0 0.0
        %404 = vmatpush1.msra.mxu0 0.0
        %405 = vmatprep.subr.mxu0 0.0
        %406 = vmatpush1.msra.mxu0 0.0
        %407 = vmatprep.subr.mxu0 0.0
        %408 = vmatpush1.msra.mxu0 0.0
        %409 = vmatprep.subr.mxu0 0.0
        %410 = vmatpush1.msra.mxu0 0.0
        %411 = vmatprep.subr.mxu0 0.0
        %412 = vmatpush1.msra.mxu0 0.0
        %413 = vmatprep.subr.mxu0 0.0
        %414 = vmatpush1.msra.mxu0 0.0
        %415 = vmatprep.subr.mxu0 0.0
        %416 = vmatpush1.msra.mxu0 0.0
        %417 = vmatprep.subr.mxu0 0.0
        %418 = vmatpush1.msra.mxu0 0.0
        %419 = vmatprep.subr.mxu0 0.0
        %420 = vmatpush1.msra.mxu0 0.0
        %421 = vmatprep.mubr.f32.mxu0 0.0
        %422 = vmatmul.mubr.f32.gmra.mrb[0].mxu0 %v348
        %v423 = vpop.f32.mrb[0].mxu0
        %v424 = vadd.f32 %v344, %v423
        %v425 = vpop.f32.mrb[0].mxu0
        %v426 = vadd.f32 %v344, %v425
        %427 = vdwg.mxu0
        %v428 = vmax.f32 %v424, 0.0
        %v429 = vmax.f32 %v426, 0.0
        %430 = vst [vmem:[%s204] sm:$0xf] %v428
        %431 = vst [vmem:[%s204 + $0x8] sm:$0xf] %v429
        %433 = vst [vmem:[#allocation2] sm:$0xf] %v205
        %434 = vst [vmem:[#allocation2 + $0x8] sm:$0xf] %v209
        %435 = vrot.lane.b32.xlu0 %v223, 126
        %v436 = vpop.permute.xlu0 %435
        %437 = vrot.lane.b32.xlu0 %v205, 126
        %v438 = vpop.permute.xlu0 %437
        %439 = vrot.lane.b32.xlu0 %v224, 126
        %v440 = vpop.permute.xlu0 %439
        %vm441 = vcmask 1031168
        %v442 = vsel %vm441, %v436, %v438
        %v443 = vsel %vm441, %v438, %v440
        %446 = vst [vmem:[#allocation2] sm:$0xf0] %v442
        %447 = vst [vmem:[#allocation2 + $0x8] sm:$0xf0] %v443
        %448 = vrot.lane.b32.xlu0 %v205, 124
        %v449 = vpop.permute.xlu0 %448
        %450 = vrot.lane.b32.xlu0 %v209, 124
        %v451 = vpop.permute.xlu0 %450
        %452 = vrot.lane.b32.xlu0 %v206, 124
        %v453 = vpop.permute.xlu0 %452
        %vm454 = vcmask 1014784
        %v455 = vsel %vm454, %v449, %v451
        %v456 = vsel %vm454, %v451, %v453
        %459 = vst [vmem:[#allocation2 + $0x10] sm:$0xf] %v455
        %460 = vst [vmem:[#allocation2 + $0x18] sm:$0xf] %v456
        %461 = vrot.lane.b32.xlu0 %v223, 88
        %v462 = vpop.permute.xlu0 %461
        %463 = vrot.lane.b32.xlu0 %v205, 88
        %v464 = vpop.permute.xlu0 %463
        %465 = vrot.lane.b32.xlu0 %v224, 88
        %v466 = vpop.permute.xlu0 %465
        %vm467 = vcmask 719872
        %v468 = vsel %vm467, %v462, %v464
        %v469 = vsel %vm467, %v464, %v466
        %472 = vst [vmem:[#allocation2 + $0x10] sm:$0xf0] %v468
        %473 = vst [vmem:[#allocation2 + $0x18] sm:$0xf0] %v469
        %474 = vst [vmem:[#allocation2 + $0x20] sm:$0xf] %v271
        %475 = vst [vmem:[#allocation2 + $0x28] sm:$0xf] %v272
        %476 = vrot.lane.b32.xlu0 %v223, 84
        %v477 = vpop.permute.xlu0 %476
        %478 = vrot.lane.b32.xlu0 %v205, 84
        %v479 = vpop.permute.xlu0 %478
        %480 = vrot.lane.b32.xlu0 %v224, 84
        %v481 = vpop.permute.xlu0 %480
        %vm482 = vcmask 687104
        %v483 = vsel %vm482, %v477, %v479
        %v484 = vsel %vm482, %v479, %v481
        %487 = vst [vmem:[#allocation2 + $0x20] sm:$0xf0] %v483
        %488 = vst [vmem:[#allocation2 + $0x28] sm:$0xf0] %v484
        %489 = vrot.lane.b32.xlu0 %v205, 48
        %v490 = vpop.permute.xlu0 %489
        %491 = vrot.lane.b32.xlu0 %v209, 48
        %v492 = vpop.permute.xlu0 %491
        %493 = vrot.lane.b32.xlu0 %v206, 48
        %v494 = vpop.permute.xlu0 %493
        %vm495 = vcmask 392192
        %v496 = vsel %vm495, %v490, %v492
        %v497 = vsel %vm495, %v492, %v494
        %500 = vst [vmem:[#allocation2 + $0x30] sm:$0xf] %v496
        %501 = vst [vmem:[#allocation2 + $0x38] sm:$0xf] %v497
        %502 = vrot.lane.b32.xlu0 %v223, 46
        %v503 = vpop.permute.xlu0 %502
        %504 = vrot.lane.b32.xlu0 %v205, 46
        %v505 = vpop.permute.xlu0 %504
        %506 = vrot.lane.b32.xlu0 %v224, 46
        %v507 = vpop.permute.xlu0 %506
        %vm508 = vcmask 375808
        %v509 = vsel %vm508, %v503, %v505
        %v510 = vsel %vm508, %v505, %v507
        %513 = vst [vmem:[#allocation2 + $0x30] sm:$0xf0] %v509
        %514 = vst [vmem:[#allocation2 + $0x38] sm:$0xf0] %v510
        %515 = vrot.lane.b32.xlu0 %v205, 44
        %v516 = vpop.permute.xlu0 %515
        %517 = vrot.lane.b32.xlu0 %v209, 44
        %v518 = vpop.permute.xlu0 %517
        %519 = vrot.lane.b32.xlu0 %v206, 44
        %v520 = vpop.permute.xlu0 %519
        %vm521 = vcmask 359424
        %v522 = vsel %vm521, %v516, %v518
        %v523 = vsel %vm521, %v518, %v520
        %526 = vst [vmem:[#allocation2 + $0x40] sm:$0xf] %v522
        %527 = vst [vmem:[#allocation2 + $0x48] sm:$0xf] %v523
        %s528 = scalar_lea.vmem %s1, 4
        %v529 = vld [vmem:[%s528] sm:$0xf]
        %v530 = vld [vmem:[#allocation2] sm:$0xff]
        %v531 = vld [vmem:[#allocation2 + $0x8] sm:$0xff]
        %v532 = vld [vmem:[#allocation2 + $0x10] sm:$0xff]
        %v533 = vld [vmem:[#allocation2 + $0x18] sm:$0xff]
        %v534 = vld [vmem:[#allocation2 + $0x20] sm:$0xff]
        %v535 = vld [vmem:[#allocation2 + $0x28] sm:$0xff]
        %v536 = vld [vmem:[#allocation2 + $0x30] sm:$0xff]
        %v537 = vld [vmem:[#allocation2 + $0x38] sm:$0xff]
        %v538 = vld [vmem:[#allocation2 + $0x40] sm:$0xf]
        %v539 = vld [vmem:[#allocation2 + $0x48] sm:$0xf]
        %s540 = scalar_lea.vmem %s2, 4
        %v541 = vld [vmem:[%s540] sm:$0xf]
        %543 = vset.pattern.permute.xlu0 0
        %544 = vperm.xlu0 %543, %v541
        %v545 = vpop.permute.xlu0 %544
        %v548 = vsel %vm346, %v529, 0
        %v551 = vsel %vm350, %v538, 0
        %v554 = vsel %vm350, %v539, 0
        %556 = vmatprep.subr.mxu0 %v531
        %557 = vmatpush1.msra.mxu0 %v530
        %558 = vmatprep.subr.mxu0 %v533
        %559 = vmatpush1.msra.mxu0 %v532
        %560 = vmatprep.subr.mxu0 %v535
        %561 = vmatpush1.msra.mxu0 %v534
        %562 = vmatprep.subr.mxu0 %v537
        %563 = vmatpush1.msra.mxu0 %v536
        %564 = vmatprep.subr.mxu0 %v554
        %565 = vmatpush1.msra.mxu0 %v551
        %566 = vmatprep.subr.mxu0 0.0
        %567 = vmatpush1.msra.mxu0 0.0
        %568 = vmatprep.subr.mxu0 0.0
        %569 = vmatpush1.msra.mxu0 0.0
        %570 = vmatprep.subr.mxu0 0.0
        %571 = vmatpush1.msra.mxu0 0.0
        %572 = vmatprep.subr.mxu0 0.0
        %573 = vmatpush1.msra.mxu0 0.0
        %574 = vmatprep.subr.mxu0 0.0
        %575 = vmatpush1.msra.mxu0 0.0
        %576 = vmatprep.subr.mxu0 0.0
        %577 = vmatpush1.msra.mxu0 0.0
        %578 = vmatprep.subr.mxu0 0.0
        %579 = vmatpush1.msra.mxu0 0.0
        %580 = vmatprep.subr.mxu0 0.0
        %581 = vmatpush1.msra.mxu0 0.0
        %582 = vmatprep.subr.mxu0 0.0
        %583 = vmatpush1.msra.mxu0 0.0
        %584 = vmatprep.subr.mxu0 0.0
        %585 = vmatpush1.msra.mxu0 0.0
        %586 = vmatprep.subr.mxu0 0.0
        %587 = vmatpush1.msra.mxu0 0.0
        %588 = vmatprep.subr.mxu0 0.0
        %589 = vmatpush1.msra.mxu0 0.0
        %590 = vmatprep.subr.mxu0 0.0
        %591 = vmatpush1.msra.mxu0 0.0
        %592 = vmatprep.subr.mxu0 0.0
        %593 = vmatpush1.msra.mxu0 0.0
        %594 = vmatprep.subr.mxu0 0.0
        %595 = vmatpush1.msra.mxu0 0.0
        %596 = vmatprep.subr.mxu0 0.0
        %597 = vmatpush1.msra.mxu0 0.0
        %598 = vmatprep.subr.mxu0 0.0
        %599 = vmatpush1.msra.mxu0 0.0
        %600 = vmatprep.subr.mxu0 0.0
        %601 = vmatpush1.msra.mxu0 0.0
        %602 = vmatprep.subr.mxu0 0.0
        %603 = vmatpush1.msra.mxu0 0.0
        %604 = vmatprep.subr.mxu0 0.0
        %605 = vmatpush1.msra.mxu0 0.0
        %606 = vmatprep.subr.mxu0 0.0
        %607 = vmatpush1.msra.mxu0 0.0
        %608 = vmatprep.subr.mxu0 0.0
        %609 = vmatpush1.msra.mxu0 0.0
        %610 = vmatprep.subr.mxu0 0.0
        %611 = vmatpush1.msra.mxu0 0.0
        %612 = vmatprep.subr.mxu0 0.0
        %613 = vmatpush1.msra.mxu0 0.0
        %614 = vmatprep.subr.mxu0 0.0
        %615 = vmatpush1.msra.mxu0 0.0
        %616 = vmatprep.subr.mxu0 0.0
        %617 = vmatpush1.msra.mxu0 0.0
        %618 = vmatprep.subr.mxu0 0.0
        %619 = vmatpush1.msra.mxu0 0.0
        %620 = vmatprep.mubr.f32.mxu0 0.0
        %621 = vmatmul.mubr.f32.gmra.mrb[0].mxu0 %v548
        %v622 = vpop.f32.mrb[0].mxu0
        %v623 = vadd.f32 %v545, %v622
        %v624 = vpop.f32.mrb[0].mxu0
        %v625 = vadd.f32 %v545, %v624
        %626 = vdwg.mxu0
        %v627 = vmax.f32 %v623, 0.0
        %v628 = vmax.f32 %v625, 0.0
        %v631 = vrot.slane %v627, 4
        %v632 = vrot.slane %v628, 4
        %635 = vst [vmem:[%s204] sm:$0xf0] %v631
        %636 = vst [vmem:[%s204 + $0x8] sm:$0xf0] %v632
        %s637 = sand.u32 %s112, 1
        %s638 = scalar_lea.sflag [#allocation5], %s637
        %s639 = sand.u32 %s112, 1
        %s640 = smul.addr %s639, 16
        %s641 = scalar_lea.vmem [#allocation6], %s640
        // Predicated region
        $region37: #{tpu_custom_call.1} parent=31 // pred_check
          %p642 = pneg %p122
        $region38: #{tpu_custom_call.1} parent=31 // pred_check_branch
          %644 = sbr.rel (%p642) target = $region40
        $region39: #{tpu_custom_call.1} parent=31 // pred_region
          %s646 = ssub.s32 256, 256
          %647 = vsyncadd %s638, %s646
          %s648 = smul.addr %s25, 2
          %s649 = smul.addr %s24, 4
          %s650 = sadd.s32 %s648, %s649
          %s651 = smul.addr %s650, 128
          %s652 = scalar_lea.hbm %s3, %s651
          %s654 = sshll.u32 %s641, 4
          %s655 = int_to_ptr.vmem [resolvable:$true] %s654
          %657 = dma.vmem_to_hbm [thread:$0]  %s655, 256, %s652, %s638
        $region40: #{tpu_custom_call.1} parent=31 // pred_fallthru
          _
      $region32: #{tpu_custom_call.1} parent=5 // pred_fallthru
        _
      %p658 = scmp.le.s32.totalorder 2, %s15
      // Predicated region
      $region41: #{tpu_custom_call.1} parent=5 // pred_check
        %p659 = pneg %p658
      $region42: #{tpu_custom_call.1} parent=5 // pred_check_branch
        %661 = sbr.rel (%p659) target = $region44
      $region43: #{tpu_custom_call.1} parent=5 // pred_region
        %s662 = ssub.s32 %s15, 2
        // Predicated region
        $region45: #{tpu_custom_call.1} parent=43 // pred_check
          %p663 = pneg %p128
        $region46: #{tpu_custom_call.1} parent=43 // pred_check_branch
          %665 = sbr.rel (%p663) target = $region48
        $region47: #{tpu_custom_call.1} parent=43 // pred_region
          %s666 = sand.u32 %s113, 1
          %s667 = scalar_lea.sflag [#allocation5], %s666
          %s668 = sand.u32 %s113, 1
          %s669 = smul.addr %s668, 16
          %s670 = scalar_lea.vmem [#allocation6], %s669
          %671 = dma.done %s667, 256
        $region48: #{tpu_custom_call.1} parent=43 // pred_fallthru
          _
      $region44: #{tpu_custom_call.1} parent=5 // pred_fallthru
        _
    $region6: #{tpu_custom_call.1} parent=1 // loop_footer
      %s19 = sadd.s32 1, %s15
    $region7: #{tpu_custom_call.1} parent=1 // loop_footer_branch
      %14 = sbr.rel target = $region3
    $region8: #{tpu_custom_call.1} parent=1 // loop_exit
      _
    %672 = vsyncpa [#allocation4], 1
    %s673 = scalar_lea.sflag [#allocation4], 1
    %674 = vsyncpa %s673, 1
    %675 = vsyncpa [#allocation5], 1
    %s676 = scalar_lea.sflag [#allocation5], 1
    %677 = vsyncpa %s676, 1

</llo_original>
